<compile_context>
chip_gen: v6e
topology: v6e:2x2x1
jax: 0.10.0
libtpu: 0.0.40
codegen_flags: <defaults>
</compile_context>

<pallas_src>
import functools

import jax
import jax.numpy as jnp
from jax.experimental import pallas as pl
from jax.experimental.pallas import tpu as pltpu


def _round_up(v: int, m: int) -> int:
    return (v + m - 1) // m * m


def _attention_gate_kernel(x_ref, w1_ref, b1_ref, w2_ref, b2_ref, o_ref):
    """out_tile = x_tile * sigmoid( sigmoid(x_tile @ W1 + b1) @ W2 + b2 )."""
    x_f32 = x_ref[...].astype(jnp.float32)

    # First linear (D -> bottleneck): bf16 operands on the MXU, f32 accumulate.
    h = jnp.dot(x_ref[...].astype(jnp.bfloat16), w1_ref[...],
                preferred_element_type=jnp.float32)
    h = jax.nn.sigmoid(h + b1_ref[...])          # b1 is (1, Db) -> broadcasts

    # Second linear (bottleneck -> D).
    a = jnp.dot(h.astype(jnp.bfloat16), w2_ref[...],
                preferred_element_type=jnp.float32)
    a = jax.nn.sigmoid(a + b2_ref[...])          # b2 is (1, D)

    # Gate the (full-precision) input features.
    o_ref[...] = (x_f32 * a).astype(o_ref.dtype)


def _pick_batch_tile(B: int, d_pad: int, db_pad: int,
                     budget_bytes: int = 32 * 1024 * 1024) -> int:
    """Largest batch tile (multiple of 8, <=512) whose working set fits the budget."""
    weight_bytes = 2 * (d_pad * db_pad * 2) * 2      # two bf16 weights, 2-buffered
    tb = 512
    while tb > 8:
        # x + out double-buffered f32 tiles, plus f32 intermediates h and a.
        per_tile = (2 * tb * d_pad * 4) * 2 + tb * (db_pad + d_pad) * 4
        if per_tile + weight_bytes <= budget_bytes:
            break
        tb //= 2
    return max(8, tb)


@functools.partial(jax.jit, static_argnames=("tb_max",))
def medical_attention_gate(x, w1, b1, w2, b2, *, tb_max: int = 512):
    """
    Args:
      x : (B, D)  float32
      w1: (D, Db) float32   -- PyTorch attention_net[0].weight.T
      b1: (Db,) or (1, Db) float32
      w2: (Db, D) float32   -- PyTorch attention_net[2].weight.T
      b2: (D,) or (1, D) float32
    Returns:
      (B, D) float32 gated features.
    """
    B, D = x.shape
    Db = w1.shape[1]
    b1 = b1.reshape(1, Db)
    b2 = b2.reshape(1, D)

    # Lane-align feature dims; sublane/tile-align the batch dim.
    d_pad = _round_up(D, 128)
    db_pad = _round_up(Db, 128)
    TB = min(tb_max, _pick_batch_tile(B, d_pad, db_pad), _round_up(B, 8))
    TB = max(8, TB)
    b_pad = _round_up(B, TB)

    # Zero-pad. Zero rows of W2 (padded bottleneck lanes) and zero padded bias
    # lanes guarantee the padded lanes cannot leak into real output lanes.
    x_p = jnp.zeros((b_pad, d_pad), jnp.float32).at[:B, :D].set(x.astype(jnp.float32))
    w1_p = jnp.zeros((d_pad, db_pad), jnp.bfloat16).at[:D, :Db].set(w1.astype(jnp.bfloat16))
    b1_p = jnp.zeros((1, db_pad), jnp.float32).at[:, :Db].set(b1.astype(jnp.float32))
    w2_p = jnp.zeros((db_pad, d_pad), jnp.bfloat16).at[:Db, :D].set(w2.astype(jnp.bfloat16))
    b2_p = jnp.zeros((1, d_pad), jnp.float32).at[:, :D].set(b2.astype(jnp.float32))

    grid = (b_pad // TB,)

    cost = pl.CostEstimate(
        flops=4 * b_pad * d_pad * db_pad,                 # two matmuls
        transcendentals=b_pad * (d_pad + db_pad),         # two sigmoids
        bytes_accessed=(b_pad * d_pad * 4) * 2            # x read + out write (f32)
        + 2 * (d_pad * db_pad * 2),                       # bf16 weights
    )

    out_p = pl.pallas_call(
        _attention_gate_kernel,
        out_shape=jax.ShapeDtypeStruct((b_pad, d_pad), jnp.float32),
        grid_spec=pltpu.PrefetchScalarGridSpec(
            num_scalar_prefetch=0,
            grid=grid,
            in_specs=[
                pl.BlockSpec((TB, d_pad), lambda i: (i, 0)),     # x: batch-tiled
                pl.BlockSpec((d_pad, db_pad), lambda i: (0, 0)), # W1: resident
                pl.BlockSpec((1, db_pad), lambda i: (0, 0)),     # b1: resident
                pl.BlockSpec((db_pad, d_pad), lambda i: (0, 0)), # W2: resident
                pl.BlockSpec((1, d_pad), lambda i: (0, 0)),      # b2: resident
            ],
            out_specs=pl.BlockSpec((TB, d_pad), lambda i: (i, 0)),
        ),
        compiler_params=pltpu.CompilerParams(
            dimension_semantics=("parallel",),        # batch tiles are independent
            vmem_limit_bytes=48 * 1024 * 1024,        # raise v5e's 16 MiB default,
                                                      # stay within v7x's 64 MiB
        ),
        cost_estimate=cost,
    )(x_p, w1_p, b1_p, w2_p, b2_p)

    return out_p[:B, :D]


def _init_params(key, dimension):
    """Deterministic init mimicking nn.Linear default (uniform +- 1/sqrt(fan_in))."""
    bottleneck = max(1, dimension // 4)
    k1, k2, k3, k4 = jax.random.split(key, 4)

    bound1 = 1.0 / jnp.sqrt(dimension)
    w1 = jax.random.uniform(k1, (dimension, bottleneck), jnp.float32, -bound1, bound1)
    b1 = jax.random.uniform(k2, (1, bottleneck), jnp.float32, -bound1, bound1)

    bound2 = 1.0 / jnp.sqrt(bottleneck)
    w2 = jax.random.uniform(k3, (bottleneck, dimension), jnp.float32, -bound2, bound2)
    b2 = jax.random.uniform(k4, (1, dimension), jnp.float32, -bound2, bound2)
    return w1, b1, w2, b2


def _reference_f32(x, w1, b1, w2, b2):
    h = jax.nn.sigmoid(x @ w1 + b1)
    a = jax.nn.sigmoid(h @ w2 + b2)
    return x * a


def _reference_bf16_mixed(x, w1, b1, w2, b2):
    """Mirror of the kernel's dtype pipeline (bf16 MXU operands, f32 accum)."""
    h = jax.nn.sigmoid(
        jnp.dot(x.astype(jnp.bfloat16), w1.astype(jnp.bfloat16),
                preferred_element_type=jnp.float32) + b1)
    a = jax.nn.sigmoid(
        jnp.dot(h.astype(jnp.bfloat16), w2.astype(jnp.bfloat16),
                preferred_element_type=jnp.float32) + b2)
    return x * a


if __name__ == "__main__":
    key = jax.random.PRNGKey(0)
    kx, kp = jax.random.split(key)

    batch = 2
    dimension = 32  # bottleneck = 8

    x = jax.random.normal(kx, (batch, dimension), dtype=jnp.float32)
    w1, b1, w2, b2 = _init_params(kp, dimension)

    out = medical_attention_gate(x, w1, b1, w2, b2)
    out = jax.block_until_ready(out)
    assert out.shape == (batch, dimension)

    # Tight check against a reference that mirrors the kernel's bf16/f32 pipeline.
    ref_mixed = _reference_bf16_mixed(x, w1, b1, w2, b2)
    assert jnp.allclose(out, ref_mixed, atol=1e-3, rtol=1e-3), "mismatch vs mixed-precision reference"

    # Looser check against the pure-f32 PyTorch-equivalent reference
    # (bf16 matmul operands introduce ~0.2% relative error).
    ref_f32 = _reference_f32(x, w1, b1, w2, b2)
    assert jnp.allclose(out, ref_f32, atol=2e-2, rtol=2e-2), "mismatch vs f32 reference"

    print("KERNEL_OK")
</pallas_src>

<mosaic_0001>
module attributes {stable_mosaic.version = 11 : i64} {
  func.func @_attention_gate_kernel(%arg0: i32, %arg1: memref<8x128xf32, #tpu.memory_space<vmem>>, %arg2: memref<128x128xbf16, #tpu.memory_space<vmem>>, %arg3: memref<1x128xf32, #tpu.memory_space<vmem>>, %arg4: memref<128x128xbf16, #tpu.memory_space<vmem>>, %arg5: memref<1x128xf32, #tpu.memory_space<vmem>>, %arg6: memref<8x128xf32, #tpu.memory_space<vmem>>) attributes {dimension_semantics = [#tpu.dimension_semantics<parallel>], iteration_bounds = array<i64: 1>, scalar_prefetch = 0 : i64, scratch_operands = 0 : i64, tpu.core_type = #tpu.core_type<tc>, window_params = [{transform_indices = @transform_0, window_bounds = array<i64: 8, 128>}, {pipeline_mode = #tpu.pipeline_mode<synchronous>, transform_indices = @transform_1, window_bounds = array<i64: 128, 128>}, {pipeline_mode = #tpu.pipeline_mode<synchronous>, transform_indices = @transform_2, window_bounds = array<i64: 1, 128>}, {pipeline_mode = #tpu.pipeline_mode<synchronous>, transform_indices = @transform_3, window_bounds = array<i64: 128, 128>}, {pipeline_mode = #tpu.pipeline_mode<synchronous>, transform_indices = @transform_4, window_bounds = array<i64: 1, 128>}, {transform_indices = @transform_5, window_bounds = array<i64: 8, 128>}]} {
    %c0 = arith.constant 0 : index
    %c0_0 = arith.constant 0 : index
    %0 = vector.load %arg1[%c0, %c0_0] : memref<8x128xf32, #tpu.memory_space<vmem>>, vector<8x128xf32>
    %c0_1 = arith.constant 0 : index
    %c0_2 = arith.constant 0 : index
    %1 = vector.load %arg1[%c0_1, %c0_2] : memref<8x128xf32, #tpu.memory_space<vmem>>, vector<8x128xf32>
    %2 = arith.truncf %1 : vector<8x128xf32> to vector<8x128xbf16>
    %c0_3 = arith.constant 0 : index
    %c0_4 = arith.constant 0 : index
    %3 = vector.load %arg2[%c0_3, %c0_4] : memref<128x128xbf16, #tpu.memory_space<vmem>>, vector<128x128xbf16>
    %cst = arith.constant dense<0.000000e+00> : vector<8x128xf32>
    %4 = tpu.matmul %2, %3, %cst {dimension_numbers = #tpu.dot_dimension_numbers<[1], [0], [0], [1], [0, 0, 1, 1], [], []>} : vector<8x128xbf16>, vector<128x128xbf16>, vector<8x128xf32> -> vector<8x128xf32>
    %c0_5 = arith.constant 0 : index
    %c0_6 = arith.constant 0 : index
    %5 = vector.load %arg3[%c0_5, %c0_6] : memref<1x128xf32, #tpu.memory_space<vmem>>, vector<1x128xf32>
    %6 = vector.broadcast %5 : vector<1x128xf32> to vector<8x128xf32>
    %7 = arith.addf %4, %6 : vector<8x128xf32>
    %8 = arith.negf %7 : vector<8x128xf32>
    %9 = math.exp %8 : vector<8x128xf32>
    %cst_7 = arith.constant 1.000000e+00 : f32
    %10 = vector.broadcast %cst_7 : f32 to vector<8x128xf32>
    %11 = arith.addf %10, %9 : vector<8x128xf32>
    %12 = arith.divf %10, %11 : vector<8x128xf32>
    %13 = arith.truncf %12 : vector<8x128xf32> to vector<8x128xbf16>
    %c0_8 = arith.constant 0 : index
    %c0_9 = arith.constant 0 : index
    %14 = vector.load %arg4[%c0_8, %c0_9] : memref<128x128xbf16, #tpu.memory_space<vmem>>, vector<128x128xbf16>
    %cst_10 = arith.constant dense<0.000000e+00> : vector<8x128xf32>
    %15 = tpu.matmul %13, %14, %cst_10 {dimension_numbers = #tpu.dot_dimension_numbers<[1], [0], [0], [1], [0, 0, 1, 1], [], []>} : vector<8x128xbf16>, vector<128x128xbf16>, vector<8x128xf32> -> vector<8x128xf32>
    %c0_11 = arith.constant 0 : index
    %c0_12 = arith.constant 0 : index
    %16 = vector.load %arg5[%c0_11, %c0_12] : memref<1x128xf32, #tpu.memory_space<vmem>>, vector<1x128xf32>
    %17 = vector.broadcast %16 : vector<1x128xf32> to vector<8x128xf32>
    %18 = arith.addf %15, %17 : vector<8x128xf32>
    %19 = arith.negf %18 : vector<8x128xf32>
    %20 = math.exp %19 : vector<8x128xf32>
    %cst_13 = arith.constant 1.000000e+00 : f32
    %21 = vector.broadcast %cst_13 : f32 to vector<8x128xf32>
    %22 = arith.addf %21, %20 : vector<8x128xf32>
    %23 = arith.divf %21, %22 : vector<8x128xf32>
    %24 = arith.mulf %0, %23 : vector<8x128xf32>
    %c0_14 = arith.constant 0 : index
    %c0_15 = arith.constant 0 : index
    %25 = vector.load %arg6[%c0_14, %c0_15] : memref<8x128xf32, #tpu.memory_space<vmem>>, vector<8x128xf32>
    tpu.vector_store %arg6[%c0_14, %c0_15], %24 {strides = array<i32>} : memref<8x128xf32, #tpu.memory_space<vmem>>, vector<8x128xf32>,
    return
  }
  func.func @transform_0(%arg0: i32) -> (i32, i32) {
    %c0_i32 = arith.constant 0 : i32
    %c0_i32_0 = arith.constant 0 : i32
    return %arg0, %c0_i32 : i32, i32
  }
  func.func @transform_1(%arg0: i32) -> (i32, i32) {
    %c0_i32 = arith.constant 0 : i32
    %c0_i32_0 = arith.constant 0 : i32
    %c0_i32_1 = arith.constant 0 : i32
    return %c0_i32, %c0_i32_0 : i32, i32
  }
  func.func @transform_2(%arg0: i32) -> (i32, i32) {
    %c0_i32 = arith.constant 0 : i32
    %c0_i32_0 = arith.constant 0 : i32
    %c0_i32_1 = arith.constant 0 : i32
    return %c0_i32, %c0_i32_0 : i32, i32
  }
  func.func @transform_3(%arg0: i32) -> (i32, i32) {
    %c0_i32 = arith.constant 0 : i32
    %c0_i32_0 = arith.constant 0 : i32
    %c0_i32_1 = arith.constant 0 : i32
    return %c0_i32, %c0_i32_0 : i32, i32
  }
  func.func @transform_4(%arg0: i32) -> (i32, i32) {
    %c0_i32 = arith.constant 0 : i32
    %c0_i32_0 = arith.constant 0 : i32
    %c0_i32_1 = arith.constant 0 : i32
    return %c0_i32, %c0_i32_0 : i32, i32
  }
  func.func @transform_5(%arg0: i32) -> (i32, i32) {
    %c0_i32 = arith.constant 0 : i32
    %c0_i32_0 = arith.constant 0 : i32
    return %arg0, %c0_i32 : i32, i32
  }
}

</mosaic_0001>

<llo_original>
// kernel: medical_attention_gate.1
$region0: #{medical_attention_gate.1}
  #allocation0 [shape = 'u32[]', space=smem, size = 0x4, offset = 0x4, fixed_abs, tag = 'smem constant byte address 0x4 - core index']
  #allocation1 [shape = 'u32[144,128]{1,0:T(1,128)}', space=vmem, size = 0x12000, scoped, tag = 'internal scratch']
  %s0 = inlined_call_operand.vmem [shape: f32[8,128], index: 0, kind: input, shape index: {}]
  %s1 = inlined_call_operand.vmem [shape: bf16[128,128], index: 1, kind: input, shape index: {}]
  %s2 = inlined_call_operand.vmem [shape: f32[1,128], index: 2, kind: input, shape index: {}]
  %s3 = inlined_call_operand.vmem [shape: bf16[128,128], index: 3, kind: input, shape index: {}]
  %s4 = inlined_call_operand.vmem [shape: f32[1,128], index: 4, kind: input, shape index: {}]
  %s5 = inlined_call_operand.vmem [shape: f32[8,128], index: 5, kind: output, shape index: {}]
  %s6 = sld [smem:[#allocation0]]
  $region30: #{medical_attention_gate.1} parent=0
    _
  %s8 = ssub.s32 1, %s6
  %s9 = scalar_select 0, %s8, %s6
  // Predicated region
  $region2: #{medical_attention_gate.1} parent=0 // pred_check
    _
  $region3: #{medical_attention_gate.1} parent=0 // pred_check_branch
    %11 = sbr.rel (0) target = $region5
  $region4: #{medical_attention_gate.1} parent=0 // pred_region
    _
  $region5: #{medical_attention_gate.1} parent=0 // pred_fallthru
    _
  // Predicated region
  $region6: #{medical_attention_gate.1} parent=0 // pred_check
    _
  $region7: #{medical_attention_gate.1} parent=0 // pred_check_branch
    %13 = sbr.rel (0) target = $region9
  $region8: #{medical_attention_gate.1} parent=0 // pred_region
    _
  $region9: #{medical_attention_gate.1} parent=0 // pred_fallthru
    _
  // Predicated region
  $region10: #{medical_attention_gate.1} parent=0 // pred_check
    _
  $region11: #{medical_attention_gate.1} parent=0 // pred_check_branch
    %15 = sbr.rel (0) target = $region13
  $region12: #{medical_attention_gate.1} parent=0 // pred_region
    _
  $region13: #{medical_attention_gate.1} parent=0 // pred_fallthru
    _
  // Predicated region
  $region14: #{medical_attention_gate.1} parent=0 // pred_check
    _
  $region15: #{medical_attention_gate.1} parent=0 // pred_check_branch
    %17 = sbr.rel (0) target = $region17
  $region16: #{medical_attention_gate.1} parent=0 // pred_region
    _
  $region17: #{medical_attention_gate.1} parent=0 // pred_fallthru
    _
  // Predicated region
  $region18: #{medical_attention_gate.1} parent=0 // pred_check
    _
  $region19: #{medical_attention_gate.1} parent=0 // pred_check_branch
    %19 = sbr.rel (0) target = $region21
  $region20: #{medical_attention_gate.1} parent=0 // pred_region
    _
  $region21: #{medical_attention_gate.1} parent=0 // pred_fallthru
    _
  %v21 = vld [vmem:[%s0] sm:$0xff]
  %v22 = vpack.c.bf16 %v21, %v21
  %v23 = vld [vmem:[%s1] sm:$0xf]
  %v24 = vld [vmem:[%s1 + $0x4] sm:$0xf]
  %v25 = vld [vmem:[%s1 + $0x8] sm:$0xf]
  %v26 = vld [vmem:[%s1 + $0xc] sm:$0xf]
  %v27 = vld [vmem:[%s1 + $0x10] sm:$0xf]
  %v28 = vld [vmem:[%s1 + $0x14] sm:$0xf]
  %v29 = vld [vmem:[%s1 + $0x18] sm:$0xf]
  %v30 = vld [vmem:[%s1 + $0x1c] sm:$0xf]
  %v31 = vld [vmem:[%s1 + $0x20] sm:$0xf]
  %v32 = vld [vmem:[%s1 + $0x24] sm:$0xf]
  %v33 = vld [vmem:[%s1 + $0x28] sm:$0xf]
  %v34 = vld [vmem:[%s1 + $0x2c] sm:$0xf]
  %v35 = vld [vmem:[%s1 + $0x30] sm:$0xf]
  %v36 = vld [vmem:[%s1 + $0x34] sm:$0xf]
  %v37 = vld [vmem:[%s1 + $0x38] sm:$0xf]
  %v38 = vld [vmem:[%s1 + $0x3c] sm:$0xf]
  %v39 = vld [vmem:[%s2] sm:$0x1]
  %v41 = vlaneseq
  %v42 = vshrl.u32 %v41, 7
  %v43 = vsub.s32 0, %v42
  %v44 = vrot.slane %v39, %v43
  %v62 = vunpack.c.l.b16 %v23
  %v63 = vunpack.c.l.b16 %v24
  %v64 = vunpack.c.l.b16 %v25
  %v65 = vunpack.c.l.b16 %v26
  %v66 = vunpack.c.l.b16 %v27
  %v67 = vunpack.c.l.b16 %v28
  %v68 = vunpack.c.l.b16 %v29
  %v69 = vunpack.c.l.b16 %v30
  %v70 = vunpack.c.l.b16 %v31
  %v71 = vunpack.c.l.b16 %v32
  %v72 = vunpack.c.l.b16 %v33
  %v73 = vunpack.c.l.b16 %v34
  %v74 = vunpack.c.l.b16 %v35
  %v75 = vunpack.c.l.b16 %v36
  %v76 = vunpack.c.l.b16 %v37
  %v77 = vunpack.c.l.b16 %v38
  %v78 = vpack.c.b16 %v63, %v62
  %v79 = vpack.c.b16 %v65, %v64
  %v80 = vpack.c.b16 %v67, %v66
  %v81 = vpack.c.b16 %v69, %v68
  %v82 = vpack.c.b16 %v71, %v70
  %v83 = vpack.c.b16 %v73, %v72
  %v84 = vpack.c.b16 %v75, %v74
  %v85 = vpack.c.b16 %v77, %v76
  %94 = vmatprep.subr.bf16.mxu0 0
  %95 = vmatpush1.bf16.msra.mxu0 %v85
  %96 = vmatprep.subr.bf16.mxu0 0
  %97 = vmatpush1.bf16.msra.mxu0 %v84
  %98 = vmatprep.subr.bf16.mxu0 0
  %99 = vmatpush1.bf16.msra.mxu0 %v83
  %100 = vmatprep.subr.bf16.mxu0 0
  %101 = vmatpush1.bf16.msra.mxu0 %v82
  %102 = vmatprep.subr.bf16.mxu0 0
  %103 = vmatpush1.bf16.msra.mxu0 %v81
  %104 = vmatprep.subr.bf16.mxu0 0
  %105 = vmatpush1.bf16.msra.mxu0 %v80
  %106 = vmatprep.subr.bf16.mxu0 0
  %107 = vmatpush1.bf16.msra.mxu0 %v79
  %108 = vmatprep.subr.bf16.mxu0 0
  %109 = vmatpush1.bf16.msra.mxu0 %v78
  %110 = vmatprep.subr.bf16.mxu0 0
  %111 = vmatpush2.bf16.msra.mxu0 0
  %112 = vmatprep.subr.bf16.mxu0 0
  %113 = vmatpush2.bf16.msra.mxu0 0
  %114 = vmatprep.subr.bf16.mxu0 0
  %115 = vmatpush2.bf16.msra.mxu0 0
  %116 = vmatprep.subr.bf16.mxu0 0
  %117 = vmatpush2.bf16.msra.mxu0 0
  %118 = vmatprep.subr.bf16.mxu0 0
  %119 = vmatpush2.bf16.msra.mxu0 0
  %120 = vmatprep.subr.bf16.mxu0 0
  %121 = vmatpush2.bf16.msra.mxu0 0
  %122 = vmatprep.subr.bf16.mxu0 0
  %123 = vmatpush2.bf16.msra.mxu0 0
  %124 = vmatprep.subr.bf16.mxu0 0
  %125 = vmatpush2.bf16.msra.mxu0 0
  %126 = vmatprep.mubr.bf16.mxu0 0
  %127 = vmatmul.mubr.bf16.gmra.mxu0 %v22
  %v128 = vpop.f32.mrf.mxu0
  %v129 = vadd.f32 %v44, %v128
  %v130 = vpop.f32.mrf.mxu0
  %v131 = vpop.f32.mrf.mxu0
  %v132 = vpop.f32.mrf.mxu0
  %133 = vdwg.mxu0
  %v134 = vxor.u32 %v129, 2147483648
  %v135 = vmul.f32 %v134, 1.442695
  %v136 = vpow.pop %v135
  %v137 = vadd.f32 %v136, 1.0
  %v138 = vrcp.pop %v137
  %v139 = vmul.f32 1.0, %v138
  %v140 = vpack.c.bf16 %v139, %v139
  %v141 = vld [vmem:[%s3] sm:$0xf]
  %v142 = vld [vmem:[%s3 + $0x4] sm:$0xf]
  %v143 = vld [vmem:[%s3 + $0x8] sm:$0xf]
  %v144 = vld [vmem:[%s3 + $0xc] sm:$0xf]
  %v145 = vld [vmem:[%s3 + $0x10] sm:$0xf]
  %v146 = vld [vmem:[%s3 + $0x14] sm:$0xf]
  %v147 = vld [vmem:[%s3 + $0x18] sm:$0xf]
  %v148 = vld [vmem:[%s3 + $0x1c] sm:$0xf]
  %v149 = vld [vmem:[%s3 + $0x20] sm:$0xf]
  %v150 = vld [vmem:[%s3 + $0x24] sm:$0xf]
  %v151 = vld [vmem:[%s3 + $0x28] sm:$0xf]
  %v152 = vld [vmem:[%s3 + $0x2c] sm:$0xf]
  %v153 = vld [vmem:[%s3 + $0x30] sm:$0xf]
  %v154 = vld [vmem:[%s3 + $0x34] sm:$0xf]
  %v155 = vld [vmem:[%s3 + $0x38] sm:$0xf]
  %v156 = vld [vmem:[%s3 + $0x3c] sm:$0xf]
  %v157 = vld [vmem:[%s4] sm:$0x1]
  %v159 = vlaneseq
  %v160 = vshrl.u32 %v159, 7
  %v161 = vsub.s32 0, %v160
  %v162 = vrot.slane %v157, %v161
  %v180 = vunpack.c.l.b16 %v141
  %v181 = vunpack.c.l.b16 %v142
  %v182 = vunpack.c.l.b16 %v143
  %v183 = vunpack.c.l.b16 %v144
  %v184 = vunpack.c.l.b16 %v145
  %v185 = vunpack.c.l.b16 %v146
  %v186 = vunpack.c.l.b16 %v147
  %v187 = vunpack.c.l.b16 %v148
  %v188 = vunpack.c.l.b16 %v149
  %v189 = vunpack.c.l.b16 %v150
  %v190 = vunpack.c.l.b16 %v151
  %v191 = vunpack.c.l.b16 %v152
  %v192 = vunpack.c.l.b16 %v153
  %v193 = vunpack.c.l.b16 %v154
  %v194 = vunpack.c.l.b16 %v155
  %v195 = vunpack.c.l.b16 %v156
  %v196 = vpack.c.b16 %v181, %v180
  %v197 = vpack.c.b16 %v183, %v182
  %v198 = vpack.c.b16 %v185, %v184
  %v199 = vpack.c.b16 %v187, %v186
  %v200 = vpack.c.b16 %v189, %v188
  %v201 = vpack.c.b16 %v191, %v190
  %v202 = vpack.c.b16 %v193, %v192
  %v203 = vpack.c.b16 %v195, %v194
  %212 = vmatprep.subr.bf16.mxu0 0
  %213 = vmatpush1.bf16.msra.mxu0 %v203
  %214 = vmatprep.subr.bf16.mxu0 0
  %215 = vmatpush1.bf16.msra.mxu0 %v202
  %216 = vmatprep.subr.bf16.mxu0 0
  %217 = vmatpush1.bf16.msra.mxu0 %v201
  %218 = vmatprep.subr.bf16.mxu0 0
  %219 = vmatpush1.bf16.msra.mxu0 %v200
  %220 = vmatprep.subr.bf16.mxu0 0
  %221 = vmatpush1.bf16.msra.mxu0 %v199
  %222 = vmatprep.subr.bf16.mxu0 0
  %223 = vmatpush1.bf16.msra.mxu0 %v198
  %224 = vmatprep.subr.bf16.mxu0 0
  %225 = vmatpush1.bf16.msra.mxu0 %v197
  %226 = vmatprep.subr.bf16.mxu0 0
  %227 = vmatpush1.bf16.msra.mxu0 %v196
  %228 = vmatprep.subr.bf16.mxu0 0
  %229 = vmatpush2.bf16.msra.mxu0 0
  %230 = vmatprep.subr.bf16.mxu0 0
  %231 = vmatpush2.bf16.msra.mxu0 0
  %232 = vmatprep.subr.bf16.mxu0 0
  %233 = vmatpush2.bf16.msra.mxu0 0
  %234 = vmatprep.subr.bf16.mxu0 0
  %235 = vmatpush2.bf16.msra.mxu0 0
  %236 = vmatprep.subr.bf16.mxu0 0
  %237 = vmatpush2.bf16.msra.mxu0 0
  %238 = vmatprep.subr.bf16.mxu0 0
  %239 = vmatpush2.bf16.msra.mxu0 0
  %240 = vmatprep.subr.bf16.mxu0 0
  %241 = vmatpush2.bf16.msra.mxu0 0
  %242 = vmatprep.subr.bf16.mxu0 0
  %243 = vmatpush2.bf16.msra.mxu0 0
  %244 = vmatprep.mubr.bf16.mxu0 0
  %245 = vmatmul.mubr.bf16.gmra.mxu0 %v140
  %v246 = vpop.f32.mrf.mxu0
  %v247 = vadd.f32 %v162, %v246
  %v248 = vpop.f32.mrf.mxu0
  %v249 = vpop.f32.mrf.mxu0
  %v250 = vpop.f32.mrf.mxu0
  %251 = vdwg.mxu0
  %v252 = vxor.u32 %v247, 2147483648
  %v253 = vmul.f32 %v252, 1.442695
  %v254 = vpow.pop %v253
  %v255 = vadd.f32 %v254, 1.0
  %v256 = vrcp.pop %v255
  %v257 = vmul.f32 1.0, %v256
  %v258 = vmul.f32 %v21, %v257
  %259 = vst [vmem:[%s5] sm:$0xff] %v258
  // Predicated region
  $region22: #{medical_attention_gate.1} parent=0 // pred_check
    _
  $region23: #{medical_attention_gate.1} parent=0 // pred_check_branch
    %261 = sbr.rel (0) target = $region25
  $region24: #{medical_attention_gate.1} parent=0 // pred_region
    _
  $region25: #{medical_attention_gate.1} parent=0 // pred_fallthru
    _
  // Predicated region
  $region26: #{medical_attention_gate.1} parent=0 // pred_check
    _
  $region27: #{medical_attention_gate.1} parent=0 // pred_check_branch
    %263 = sbr.rel (0) target = $region29
  $region28: #{medical_attention_gate.1} parent=0 // pred_region
    _
  $region29: #{medical_attention_gate.1} parent=0 // pred_fallthru
    _

</llo_original>
